<compile_context>
chip_gen: v7x
topology: tpu7x:2x2x1
jax: 0.10.0
libtpu: 0.0.40
codegen_flags: <defaults>
</compile_context>

<pallas_src>
import functools

import jax
import jax.numpy as jnp
import numpy as np
from jax.experimental import pallas as pl
from jax.experimental.pallas import tpu as pltpu

# STSC defaults (from the PyTorch module), dimension=2 for [T, B, N] SHD inputs.
TIME_RF_CONV = 3
TIME_RF_AT = 3
REDUCTION = 1


def _stsc_kernel(halo_ref, x_ref, wconv_ref, wt_ref, b_ref, wc_ref, out_ref, xbf_ref,
                 *, rows, B, P, pad_conv, pad_at, k_conv, k_at):
    # halo_ref : (1, 2*P*B, N)  f32   rows just before / after this tile (zeros at seq edges)
    # x_ref    : (rows, N)      f32   this tile's activations (rows = t_tile * B)
    # wconv_ref: (k_conv, N)    f32   depthwise temporal-conv weights (per channel)
    # wt_ref   : (k_at, N, R)   bf16  attention Conv1d weights, pre-transposed for x @ W
    # b_ref    : (1, R)         f32   attention Conv1d bias
    # wc_ref   : (R, N)         bf16  Linear(R -> N) weight, transposed
    # out_ref  : (rows, N)      f32
    # xbf_ref  : (rows + 2*pad_at*B, N) bf16 scratch -- hoisted-cast MXU LHS slab
    PB = P * B
    AB = pad_at * B

    # ---- hoisted f32->bf16 cast: assemble the bf16 MXU-LHS slab exactly once ----
    # (slab row j corresponds to output row j - AB; no f32 slab is ever written back)
    if AB > 0:
        xbf_ref[0:AB, :] = halo_ref[0, PB - AB:PB, :].astype(jnp.bfloat16)
        xbf_ref[AB + rows:AB + rows + AB, :] = halo_ref[0, PB:PB + AB, :].astype(jnp.bfloat16)
    xbf_ref[AB:AB + rows, :] = x_ref[...].astype(jnp.bfloat16)

    # ---- attention Conv1d(N->R): k_at row-shifted matmuls, bf16 operands, f32 accumulate ----
    h = jnp.dot(xbf_ref[0:rows, :], wt_ref[0], preferred_element_type=jnp.float32)
    for k in range(1, k_at):
        off = k * B                                              # static python int
        h = h + jnp.dot(xbf_ref[off:off + rows, :], wt_ref[k],
                        preferred_element_type=jnp.float32)
    h = jnp.maximum(h + b_ref[...], 0.0)                         # bias + ReLU (f32)

    # ---- Linear(R->N, no bias) + gate: D = 1 - sigmoid(g) = 1 / (1 + exp(g)) ----
    g = jnp.dot(h.astype(jnp.bfloat16), wc_ref[...],
                preferred_element_type=jnp.float32)              # (rows, N)
    g = jnp.minimum(g, 30.0)                                     # keep exp finite for the approx recip
    d = pl.reciprocal(1.0 + jnp.exp(g), approx=True)             # EUP exp + recip, no VALU divide

    # ---- depthwise temporal conv (groups=N, no bias), f32, from shifted slices of x_ref ----
    # Boundary rows come straight from the halo block; no haloed-slab copy through vregs.
    def shifted_f32(s):
        """x at row-offset s (output row j <- tile row j + s); out-of-tile rows from halo."""
        if s == 0:
            return x_ref[...]
        parts = []
        if s < 0:
            n_halo = min(-s, rows)
            parts.append(halo_ref[0, PB + s:PB + s + n_halo, :])
            if rows + s > 0:
                parts.append(x_ref[0:rows + s, :])
        else:
            if rows - s > 0:
                parts.append(x_ref[s:rows, :])
            n_halo = min(s, rows)
            parts.append(halo_ref[0, PB + s - n_halo:PB + s, :])
        return parts[0] if len(parts) == 1 else jnp.concatenate(parts, axis=0)

    # Each tap uses a distinct (1, N) weight row, so the per-tap sublane broadcast is the
    # single natural broadcast (nothing to hoist / CSE across taps).
    y = None
    for k in range(k_conv):
        xk = shifted_f32((k - pad_conv) * B)
        term = xk * wconv_ref[k:k + 1, :]
        y = term if y is None else y + term

    out_ref[...] = (y * d).astype(out_ref.dtype)


def _vmem_budget():
    """(tile-cap bytes, scoped-vmem limit) per TPU generation.

    v5e/v6e: 128 MiB physical VMEM and HBM-bound kernel -> bigger tiles, higher limit.
    v7x / unknown: 64 MiB VMEM per TC -> keep the conservative 2 MiB / 32 MiB settings.
    """
    vmem = None
    try:
        vmem = getattr(pltpu.get_tpu_info(), "vmem_capacity_bytes", None)
    except Exception:
        vmem = None
    if vmem is not None and vmem >= 100 * 2 ** 20:
        return 4 * 2 ** 20, 64 * 2 ** 20
    return 2 * 2 ** 20, 32 * 2 ** 20


def _pick_t_tile(T, B, N, max_tile_bytes):
    """Largest time-tile whose f32 block fits max_tile_bytes, preferring >= 2 tiles
    (so the 'parallel' grid axis can shard across v7x's two TensorCores)."""
    cap = max(1, max_tile_bytes // (B * N * 4))
    aligned = [d for d in range(1, T + 1) if T % d == 0 and (d * B) % 8 == 0]
    best_any = max([d for d in aligned if d <= cap], default=None)
    best_two = max([d for d in aligned if d <= cap and T // d >= 2], default=None)
    if best_two is not None and (best_any is None or best_any <= 4 * best_two):
        return best_two
    if best_any is not None:
        return best_any
    if aligned:
        return min(aligned)          # nothing under the cap: smallest aligned tile
    return T                         # full block (always a legal BlockSpec)


def stsc_forward(x_seq, w_conv, w_at, b_at, w_c, *, t_tile=None):
    """x_seq: [T, B, N] float32. Returns y: [T, B, N] float32."""
    T, B, N = x_seq.shape
    R = w_at.shape[0]
    k_conv = w_conv.shape[-1]
    k_at = w_at.shape[-1]
    # TODO(synk): even time_rf would need PyTorch's asymmetric padding; defaults (3, 3) are odd.
    assert k_conv % 2 == 1 and k_at % 2 == 1, "odd temporal kernel sizes assumed"
    pad_conv = (k_conv - 1) // 2
    pad_at = (k_at - 1) // 2
    P = max(pad_conv, pad_at, 1)

    tile_cap_bytes, vmem_limit = _vmem_budget()
    if t_tile is None:
        t_tile = _pick_t_tile(T, B, N, tile_cap_bytes)
    if t_tile < P:                                 # tiny tiles can't carry the halo slices
        cands = [d for d in range(P, T + 1) if T % d == 0 and ((d * B) % 8 == 0 or d == T)]
        t_tile = min(cands) if cands else T
    assert T % t_tile == 0, "t_tile must divide T"
    assert t_tile == T or (t_tile * B) % 8 == 0
    assert t_tile >= P
    nt = T // t_tile
    rows = t_tile * B
    PB = P * B
    AB = pad_at * B

    # Free view: [T, B, N] -> [T*B, N]; channels stay on the lane axis, no data movement.
    x2 = x_seq.reshape(T * B, N)

    # Per-tile halo (P time steps before / after each tile) from static slices of the
    # neighbouring tiles -- no gather, no full-tensor pad.  Zeros at the sequence edges.
    xr = x_seq.reshape(nt, t_tile, B, N)
    zeros = jnp.zeros((1, P, B, N), x_seq.dtype)
    lefts = jnp.concatenate([zeros, xr[:-1, t_tile - P:]], axis=0)      # (nt, P, B, N)
    rights = jnp.concatenate([xr[1:, :P], zeros], axis=0)               # (nt, P, B, N)
    halo = jnp.concatenate([lefts, rights], axis=1).reshape(nt, 2 * PB, N)

    # Weight plumbing (tiny tensors; MXU operands pre-cast to bf16 once, outside the kernel).
    wconv_kn = jnp.transpose(w_conv[:, 0, :], (1, 0)).astype(jnp.float32)   # (K_conv, N)
    wt_at = jnp.transpose(w_at, (2, 1, 0)).astype(jnp.bfloat16)             # (K_at, N, R)
    b_at2 = b_at.reshape(1, R).astype(jnp.float32)                          # (1, R)
    wc_rn = jnp.transpose(w_c, (1, 0)).astype(jnp.bfloat16)                 # (R, N)

    kernel = functools.partial(
        _stsc_kernel, rows=rows, B=B, P=P,
        pad_conv=pad_conv, pad_at=pad_at, k_conv=k_conv, k_at=k_at)

    flops = 2 * T * B * (k_conv * N + k_at * N * R + R * N)
    bytes_accessed = (4 * (2 * T * B * N + nt * 2 * PB * N + k_conv * N + R)
                      + 2 * (k_at * N * R + R * N))
    cost = pl.CostEstimate(flops=flops, transcendentals=T * B * N,
                           bytes_accessed=bytes_accessed)

    out2 = pl.pallas_call(
        kernel,
        out_shape=jax.ShapeDtypeStruct((T * B, N), jnp.float32),
        grid=(nt,),
        in_specs=[
            pl.BlockSpec((1, 2 * PB, N), lambda t: (t, 0, 0)),   # halo rows for this tile
            pl.BlockSpec((rows, N), lambda t: (t, 0)),           # activation tile
            pl.BlockSpec((k_conv, N), lambda t: (0, 0)),
            pl.BlockSpec((k_at, N, R), lambda t: (0, 0, 0)),
            pl.BlockSpec((1, R), lambda t: (0, 0)),
            pl.BlockSpec((R, N), lambda t: (0, 0)),
        ],
        out_specs=pl.BlockSpec((rows, N), lambda t: (t, 0)),
        scratch_shapes=[pltpu.VMEM((rows + 2 * AB, N), jnp.bfloat16)],
        compiler_params=pltpu.CompilerParams(
            dimension_semantics=("parallel",),
            vmem_limit_bytes=vmem_limit),
        cost_estimate=cost,
    )(halo, x2, wconv_kn, wt_at, b_at2, wc_rn)

    return out2.reshape(T, B, N)                                 # free view back to [T, B, N]


def stsc_reference(x_seq, w_conv, w_at, b_at, w_c):
    """Pure-JAX reference mirroring the PyTorch forward (dimension=2)."""
    T, B, N = x_seq.shape
    pad_conv = (w_conv.shape[-1] - 1) // 2
    pad_at = (w_at.shape[-1] - 1) // 2
    x_bnt = jnp.transpose(x_seq, (1, 2, 0))               # [B, N, T]
    y_conv = jax.lax.conv_general_dilated(
        x_bnt, w_conv, window_strides=(1,), padding=[(pad_conv, pad_conv)],
        dimension_numbers=("NCH", "OIH", "NCH"), feature_group_count=N)
    h = jax.lax.conv_general_dilated(
        x_bnt, w_at, window_strides=(1,), padding=[(pad_at, pad_at)],
        dimension_numbers=("NCH", "OIH", "NCH"))
    h = h + b_at[None, :, None]                            # [B, R, T]
    h = jnp.maximum(jnp.transpose(h, (0, 2, 1)), 0.0)      # [B, T, R]
    g = h @ w_c.T                                          # [B, T, N]
    d = 1.0 - jax.nn.sigmoid(g)
    y = jnp.transpose(y_conv, (0, 2, 1)) * d               # [B, T, N]
    return jnp.transpose(y, (1, 0, 2))                     # [T, B, N]


if __name__ == "__main__":
    # Small but TPU-friendly shapes: N=128 keeps channels lane-dense, B=8 keeps rows 8-aligned.
    T, B, N = 32, 8, 128
    R = N // REDUCTION

    key = jax.random.PRNGKey(0)
    k_x, k_wc, k_wa, k_ba, k_wl = jax.random.split(key, 5)

    x_seq = jax.random.normal(k_x, (T, B, N), dtype=jnp.float32)
    # Deterministic parameter init (shapes match the PyTorch module's __init__).
    w_conv = jax.random.normal(k_wc, (N, 1, TIME_RF_CONV), dtype=jnp.float32) * 0.2   # depthwise Conv1d
    w_at = jax.random.normal(k_wa, (R, N, TIME_RF_AT), dtype=jnp.float32) * 0.1       # recv_T weight
    b_at = jax.random.normal(k_ba, (R,), dtype=jnp.float32) * 0.1                     # recv_T bias
    w_c = jax.random.normal(k_wl, (N, R), dtype=jnp.float32) * 0.1                    # recv_C Linear weight

    y_ref = stsc_reference(x_seq, w_conv, w_at, b_at, w_c)

    # Exercise both an explicit time tiling (4 grid steps) and the auto-picked tiling (>=2 tiles).
    for tt in (8, None):
        fwd = jax.jit(functools.partial(stsc_forward, t_tile=tt))
        y = jax.block_until_ready(fwd(x_seq, w_conv, w_at, b_at, w_c))
        assert y.shape == (T, B, N)
        np.testing.assert_allclose(np.asarray(y), np.asarray(y_ref), rtol=2e-2, atol=2e-2)

    print("KERNEL_OK")
</pallas_src>

<mosaic_0001>
module attributes {stable_mosaic.version = 11 : i64} {
  func.func @_stsc_kernel(%arg0: i32, %arg1: memref<1x16x128xf32, #tpu.memory_space<vmem>>, %arg2: memref<64x128xf32, #tpu.memory_space<vmem>>, %arg3: memref<3x128xf32, #tpu.memory_space<vmem>>, %arg4: memref<3x128x128xbf16, #tpu.memory_space<vmem>>, %arg5: memref<1x128xf32, #tpu.memory_space<vmem>>, %arg6: memref<128x128xbf16, #tpu.memory_space<vmem>>, %arg7: memref<64x128xf32, #tpu.memory_space<vmem>>, %arg8: memref<80x128xbf16, #tpu.memory_space<vmem>>) attributes {dimension_semantics = [#tpu.dimension_semantics<parallel>], iteration_bounds = array<i64: 4>, scalar_prefetch = 0 : i64, scratch_operands = 1 : i64, tpu.core_type = #tpu.core_type<tc>, window_params = [{transform_indices = @transform_0, window_bounds = array<i64: 1, 16, 128>}, {transform_indices = @transform_1, window_bounds = array<i64: 64, 128>}, {pipeline_mode = #tpu.pipeline_mode<synchronous>, transform_indices = @transform_2, window_bounds = array<i64: 3, 128>}, {pipeline_mode = #tpu.pipeline_mode<synchronous>, transform_indices = @transform_3, window_bounds = array<i64: 3, 128, 128>}, {pipeline_mode = #tpu.pipeline_mode<synchronous>, transform_indices = @transform_4, window_bounds = array<i64: 1, 128>}, {pipeline_mode = #tpu.pipeline_mode<synchronous>, transform_indices = @transform_5, window_bounds = array<i64: 128, 128>}, {transform_indices = @transform_6, window_bounds = array<i64: 64, 128>}]} {
    %c0 = arith.constant 0 : index
    %c0_0 = arith.constant 0 : index
    %c0_1 = arith.constant 0 : index
    %0 = vector.load %arg1[%c0, %c0_0, %c0_1] : memref<1x16x128xf32, #tpu.memory_space<vmem>>, vector<1x8x128xf32>
    %1 = vector.shape_cast %0 : vector<1x8x128xf32> to vector<8x128xf32>
    %2 = arith.truncf %1 : vector<8x128xf32> to vector<8x128xbf16>
    %c0_2 = arith.constant 0 : index
    %c0_3 = arith.constant 0 : index
    %3 = vector.load %arg8[%c0_2, %c0_3] : memref<80x128xbf16, #tpu.memory_space<vmem>>, vector<8x128xbf16>
    tpu.vector_store %arg8[%c0_2, %c0_3], %2 {strides = array<i32>} : memref<80x128xbf16, #tpu.memory_space<vmem>>, vector<8x128xbf16>,
    %c0_4 = arith.constant 0 : index
    %c8 = arith.constant 8 : index
    %c0_5 = arith.constant 0 : index
    %4 = vector.load %arg1[%c0_4, %c8, %c0_5] : memref<1x16x128xf32, #tpu.memory_space<vmem>>, vector<1x8x128xf32>
    %5 = vector.shape_cast %4 : vector<1x8x128xf32> to vector<8x128xf32>
    %6 = arith.truncf %5 : vector<8x128xf32> to vector<8x128xbf16>
    %c72 = arith.constant 72 : index
    %c0_6 = arith.constant 0 : index
    %7 = vector.load %arg8[%c72, %c0_6] : memref<80x128xbf16, #tpu.memory_space<vmem>>, vector<8x128xbf16>
    tpu.vector_store %arg8[%c72, %c0_6], %6 {strides = array<i32>} : memref<80x128xbf16, #tpu.memory_space<vmem>>, vector<8x128xbf16>,
    %c0_7 = arith.constant 0 : index
    %c0_8 = arith.constant 0 : index
    %8 = vector.load %arg2[%c0_7, %c0_8] : memref<64x128xf32, #tpu.memory_space<vmem>>, vector<64x128xf32>
    %9 = arith.truncf %8 : vector<64x128xf32> to vector<64x128xbf16>
    %c8_9 = arith.constant 8 : index
    %c0_10 = arith.constant 0 : index
    %10 = vector.load %arg8[%c8_9, %c0_10] : memref<80x128xbf16, #tpu.memory_space<vmem>>, vector<64x128xbf16>
    tpu.vector_store %arg8[%c8_9, %c0_10], %9 {strides = array<i32>} : memref<80x128xbf16, #tpu.memory_space<vmem>>, vector<64x128xbf16>,
    %c0_11 = arith.constant 0 : index
    %c0_12 = arith.constant 0 : index
    %11 = vector.load %arg8[%c0_11, %c0_12] : memref<80x128xbf16, #tpu.memory_space<vmem>>, vector<64x128xbf16>
    %c0_13 = arith.constant 0 : index
    %c0_14 = arith.constant 0 : index
    %c0_15 = arith.constant 0 : index
    %12 = vector.load %arg4[%c0_13, %c0_14, %c0_15] : memref<3x128x128xbf16, #tpu.memory_space<vmem>>, vector<1x128x128xbf16>
    %13 = vector.shape_cast %12 : vector<1x128x128xbf16> to vector<128x128xbf16>
    %cst = arith.constant dense<0.000000e+00> : vector<64x128xf32>
    %14 = tpu.matmul %11, %13, %cst {dimension_numbers = #tpu.dot_dimension_numbers<[1], [0], [0], [1], [0, 0, 1, 1], [], []>} : vector<64x128xbf16>, vector<128x128xbf16>, vector<64x128xf32> -> vector<64x128xf32>
    %c8_16 = arith.constant 8 : index
    %c0_17 = arith.constant 0 : index
    %15 = vector.load %arg8[%c8_16, %c0_17] : memref<80x128xbf16, #tpu.memory_space<vmem>>, vector<64x128xbf16>
    %c1 = arith.constant 1 : index
    %c0_18 = arith.constant 0 : index
    %c0_19 = arith.constant 0 : index
    %16 = vector.load %arg4[%c1, %c0_18, %c0_19] : memref<3x128x128xbf16, #tpu.memory_space<vmem>>, vector<1x128x128xbf16>
    %17 = vector.shape_cast %16 : vector<1x128x128xbf16> to vector<128x128xbf16>
    %cst_20 = arith.constant dense<0.000000e+00> : vector<64x128xf32>
    %18 = tpu.matmul %15, %17, %cst_20 {dimension_numbers = #tpu.dot_dimension_numbers<[1], [0], [0], [1], [0, 0, 1, 1], [], []>} : vector<64x128xbf16>, vector<128x128xbf16>, vector<64x128xf32> -> vector<64x128xf32>
    %19 = arith.addf %14, %18 : vector<64x128xf32>
    %c16 = arith.constant 16 : index
    %c0_21 = arith.constant 0 : index
    %20 = vector.load %arg8[%c16, %c0_21] : memref<80x128xbf16, #tpu.memory_space<vmem>>, vector<64x128xbf16>
    %c2 = arith.constant 2 : index
    %c0_22 = arith.constant 0 : index
    %c0_23 = arith.constant 0 : index
    %21 = vector.load %arg4[%c2, %c0_22, %c0_23] : memref<3x128x128xbf16, #tpu.memory_space<vmem>>, vector<1x128x128xbf16>
    %22 = vector.shape_cast %21 : vector<1x128x128xbf16> to vector<128x128xbf16>
    %cst_24 = arith.constant dense<0.000000e+00> : vector<64x128xf32>
    %23 = tpu.matmul %20, %22, %cst_24 {dimension_numbers = #tpu.dot_dimension_numbers<[1], [0], [0], [1], [0, 0, 1, 1], [], []>} : vector<64x128xbf16>, vector<128x128xbf16>, vector<64x128xf32> -> vector<64x128xf32>
    %24 = arith.addf %19, %23 : vector<64x128xf32>
    %c0_25 = arith.constant 0 : index
    %c0_26 = arith.constant 0 : index
    %25 = vector.load %arg5[%c0_25, %c0_26] : memref<1x128xf32, #tpu.memory_space<vmem>>, vector<1x128xf32>
    %26 = vector.broadcast %25 : vector<1x128xf32> to vector<64x128xf32>
    %27 = arith.addf %24, %26 : vector<64x128xf32>
    %cst_27 = arith.constant 0.000000e+00 : f32
    %28 = vector.broadcast %cst_27 : f32 to vector<64x128xf32>
    %29 = arith.maximumf %27, %28 : vector<64x128xf32>
    %30 = arith.truncf %29 : vector<64x128xf32> to vector<64x128xbf16>
    %c0_28 = arith.constant 0 : index
    %c0_29 = arith.constant 0 : index
    %31 = vector.load %arg6[%c0_28, %c0_29] : memref<128x128xbf16, #tpu.memory_space<vmem>>, vector<128x128xbf16>
    %cst_30 = arith.constant dense<0.000000e+00> : vector<64x128xf32>
    %32 = tpu.matmul %30, %31, %cst_30 {dimension_numbers = #tpu.dot_dimension_numbers<[1], [0], [0], [1], [0, 0, 1, 1], [], []>} : vector<64x128xbf16>, vector<128x128xbf16>, vector<64x128xf32> -> vector<64x128xf32>
    %cst_31 = arith.constant 3.000000e+01 : f32
    %33 = vector.broadcast %cst_31 : f32 to vector<64x128xf32>
    %34 = arith.minimumf %32, %33 : vector<64x128xf32>
    %35 = math.exp %34 : vector<64x128xf32>
    %cst_32 = arith.constant 1.000000e+00 : f32
    %36 = vector.broadcast %cst_32 : f32 to vector<64x128xf32>
    %37 = arith.addf %36, %35 : vector<64x128xf32>
    %38 = tpu.reciprocal %37 {approx = true} : vector<64x128xf32> -> vector<64x128xf32>
    %c0_33 = arith.constant 0 : index
    %c0_34 = arith.constant 0 : index
    %c0_35 = arith.constant 0 : index
    %39 = vector.load %arg1[%c0_33, %c0_34, %c0_35] : memref<1x16x128xf32, #tpu.memory_space<vmem>>, vector<1x8x128xf32>
    %40 = vector.shape_cast %39 : vector<1x8x128xf32> to vector<8x128xf32>
    %c0_36 = arith.constant 0 : index
    %c0_37 = arith.constant 0 : index
    %41 = vector.load %arg2[%c0_36, %c0_37] : memref<64x128xf32, #tpu.memory_space<vmem>>, vector<56x128xf32>
    %42 = tpu.concatenate %40, %41 in 0 : vector<8x128xf32>, vector<56x128xf32> -> vector<64x128xf32>
    %c0_38 = arith.constant 0 : index
    %c0_39 = arith.constant 0 : index
    %43 = vector.load %arg3[%c0_38, %c0_39] : memref<3x128xf32, #tpu.memory_space<vmem>>, vector<1x128xf32>
    %44 = vector.broadcast %43 : vector<1x128xf32> to vector<64x128xf32>
    %45 = arith.mulf %42, %44 : vector<64x128xf32>
    %c0_40 = arith.constant 0 : index
    %c0_41 = arith.constant 0 : index
    %46 = vector.load %arg2[%c0_40, %c0_41] : memref<64x128xf32, #tpu.memory_space<vmem>>, vector<64x128xf32>
    %c1_42 = arith.constant 1 : index
    %c0_43 = arith.constant 0 : index
    %47 = vector.load %arg3[%c1_42, %c0_43] : memref<3x128xf32, #tpu.memory_space<vmem>>, vector<1x128xf32>
    %48 = vector.broadcast %47 : vector<1x128xf32> to vector<64x128xf32>
    %49 = arith.mulf %46, %48 : vector<64x128xf32>
    %50 = arith.addf %45, %49 : vector<64x128xf32>
    %c8_44 = arith.constant 8 : index
    %c0_45 = arith.constant 0 : index
    %51 = vector.load %arg2[%c8_44, %c0_45] : memref<64x128xf32, #tpu.memory_space<vmem>>, vector<56x128xf32>
    %c0_46 = arith.constant 0 : index
    %c8_47 = arith.constant 8 : index
    %c0_48 = arith.constant 0 : index
    %52 = vector.load %arg1[%c0_46, %c8_47, %c0_48] : memref<1x16x128xf32, #tpu.memory_space<vmem>>, vector<1x8x128xf32>
    %53 = vector.shape_cast %52 : vector<1x8x128xf32> to vector<8x128xf32>
    %54 = tpu.concatenate %51, %53 in 0 : vector<56x128xf32>, vector<8x128xf32> -> vector<64x128xf32>
    %c2_49 = arith.constant 2 : index
    %c0_50 = arith.constant 0 : index
    %55 = vector.load %arg3[%c2_49, %c0_50] : memref<3x128xf32, #tpu.memory_space<vmem>>, vector<1x128xf32>
    %56 = vector.broadcast %55 : vector<1x128xf32> to vector<64x128xf32>
    %57 = arith.mulf %54, %56 : vector<64x128xf32>
    %58 = arith.addf %50, %57 : vector<64x128xf32>
    %59 = arith.mulf %58, %38 : vector<64x128xf32>
    %c0_51 = arith.constant 0 : index
    %c0_52 = arith.constant 0 : index
    %60 = vector.load %arg7[%c0_51, %c0_52] : memref<64x128xf32, #tpu.memory_space<vmem>>, vector<64x128xf32>
    tpu.vector_store %arg7[%c0_51, %c0_52], %59 {strides = array<i32>} : memref<64x128xf32, #tpu.memory_space<vmem>>, vector<64x128xf32>,
    return
  }
  func.func @transform_0(%arg0: i32) -> (i32, i32, i32) {
    %c0_i32 = arith.constant 0 : i32
    %c0_i32_0 = arith.constant 0 : i32
    %c0_i32_1 = arith.constant 0 : i32
    return %arg0, %c0_i32, %c0_i32_0 : i32, i32, i32
  }
  func.func @transform_1(%arg0: i32) -> (i32, i32) {
    %c0_i32 = arith.constant 0 : i32
    %c0_i32_0 = arith.constant 0 : i32
    return %arg0, %c0_i32 : i32, i32
  }
  func.func @transform_2(%arg0: i32) -> (i32, i32) {
    %c0_i32 = arith.constant 0 : i32
    %c0_i32_0 = arith.constant 0 : i32
    %c0_i32_1 = arith.constant 0 : i32
    return %c0_i32, %c0_i32_0 : i32, i32
  }
  func.func @transform_3(%arg0: i32) -> (i32, i32, i32) {
    %c0_i32 = arith.constant 0 : i32
    %c0_i32_0 = arith.constant 0 : i32
    %c0_i32_1 = arith.constant 0 : i32
    %c0_i32_2 = arith.constant 0 : i32
    return %c0_i32, %c0_i32_0, %c0_i32_1 : i32, i32, i32
  }
  func.func @transform_4(%arg0: i32) -> (i32, i32) {
    %c0_i32 = arith.constant 0 : i32
    %c0_i32_0 = arith.constant 0 : i32
    %c0_i32_1 = arith.constant 0 : i32
    return %c0_i32, %c0_i32_0 : i32, i32
  }
  func.func @transform_5(%arg0: i32) -> (i32, i32) {
    %c0_i32 = arith.constant 0 : i32
    %c0_i32_0 = arith.constant 0 : i32
    %c0_i32_1 = arith.constant 0 : i32
    return %c0_i32, %c0_i32_0 : i32, i32
  }
  func.func @transform_6(%arg0: i32) -> (i32, i32) {
    %c0_i32 = arith.constant 0 : i32
    %c0_i32_0 = arith.constant 0 : i32
    return %arg0, %c0_i32 : i32, i32
  }
}

</mosaic_0001>

<llo_original>
// kernel: stsc_forward.1
$region0: #{stsc_forward.1}
  #allocation0 [shape = 'u32[]', space=smem, size = 0x4, offset = 0x4, fixed_abs, tag = 'smem constant byte address 0x4 - core index']
  #allocation1 [shape = 'u32[144,128]{1,0:T(1,128)}', space=vmem, size = 0x12000, scoped, tag = 'internal scratch']
  #allocation2 [shape = 'bf16[80,128]{1,0:T(16,128)(2,1)}', space=vmem, size = 0x5000, scoped, tag = 'scratch operand']
  %s0 = inlined_call_operand.vmem [shape: f32[4,16,128], index: 0, kind: input, shape index: {}]
  %s1 = inlined_call_operand.vmem [shape: f32[256,128], index: 1, kind: input, shape index: {}]
  %s2 = inlined_call_operand.vmem [shape: f32[3,128], index: 2, kind: input, shape index: {}]
  %s3 = inlined_call_operand.vmem [shape: bf16[3,128,128], index: 3, kind: input, shape index: {}]
  %s4 = inlined_call_operand.vmem [shape: f32[1,128], index: 4, kind: input, shape index: {}]
  %s5 = inlined_call_operand.vmem [shape: bf16[128,128], index: 5, kind: input, shape index: {}]
  %s6 = inlined_call_operand.hbm [shape: f32[256,128], index: 6, kind: output, shape index: {}]
  %s7 = sld [smem:[#allocation0]]
  $region57: #{stsc_forward.1} parent=0
    _
  %s9 = ssub.s32 1, %s7
  %s10 = scalar_select 0, %s9, %s7
  $region1: #{stsc_forward.1} parent=0
    #allocation3 [shape = 'u8[65536]{0}', space=vmem, size = 0x10000, scoped, tag = 'output window, operand 0']
    #allocation4 [shape = 's32[2]{0}', space=sflag, size = 0x8, scoped, tag = 'scoped memory for stsc_forward.1']
    %11 = vsyncpa [#allocation4], 0
    %s12 = scalar_lea.sflag [#allocation4], 1
    %13 = vsyncpa %s12, 0
    loop: start=0, step=1, limit=6
    $region2: #{stsc_forward.1} parent=1 // loop_pre_header
      _
    $region3: #{stsc_forward.1} parent=1 // loop_header
      %s15 = sphi 0, %s19
      %p16 = scmp.ge.s32.totalorder %s15, 6
      %s25 = sphi 0, %s27
      %s28 = sphi 0, %s25
      %s29 = sphi 0, %s28
      %s45 = sphi 0, %s29
      %s51 = sphi 0, %s53
      %s54 = sphi 0, %s51
      %s55 = sphi 0, %s54
      %s71 = sphi 0, %s55
      %s75 = sphi 0, %s75
      %s77 = sphi 0, %s75
      %s78 = sphi 0, %s77
      %s92 = sphi 0, %s78
      %s96 = sphi 0, %s96
      %s98 = sphi 0, %s96
      %s99 = sphi 0, %s98
      %s113 = sphi 0, %s99
      %s117 = sphi 0, %s117
      %s119 = sphi 0, %s117
      %s120 = sphi 0, %s119
      %s134 = sphi 0, %s120
      %s138 = sphi 0, %s138
      %s140 = sphi 0, %s138
      %s141 = sphi 0, %s140
      %s155 = sphi 0, %s141
      %s161 = sphi 0, %s163
      %s164 = sphi 0, %s161
      %s165 = sphi 0, %s164
      %s181 = sphi 0, %s165
    $region4: #{stsc_forward.1} parent=1 // loop_header_branch
      %18 = sbr.rel (%p16) target = $region8
    $region5: #{stsc_forward.1} parent=1 // loop_body
      %s20 = ssub.s32 %s15, 1
      %s21 = ssub.s32 %s15, 2
      %s22 = sadd.s32 %s15, 1
      %s23 = ssub.s32 %s15, %s22
      %p24 = scmp.eq.s32.totalorder %s23, 0
      %s26 = sadd.s32 %s25, 1
      %s27 = scalar_select %p24, %s25, %s26
      %p30 = pneg %p24
      %p31 = scmp.eq.s32.totalorder %s15, 3
      %p32 = por %p30, %p31
      %p33 = scmp.ne.s32.totalorder %s25, %s28
      %p34 = scmp.eq.s32.totalorder %s15, 0
      %p35 = por %p33, %p34
      %p36 = scmp.ne.s32.totalorder %s25, %s28
      %p37 = scmp.eq.s32.totalorder %s20, 3
      %p38 = por %p36, %p37
      %p39 = scmp.ne.s32.totalorder %s28, %s29
      %p40 = scmp.eq.s32.totalorder %s20, 0
      %p41 = por %p39, %p40
      %p42 = scmp.ne.s32.totalorder %s28, %s29
      %p43 = scmp.eq.s32.totalorder %s21, 3
      %p44 = por %p42, %p43
      %p46 = scmp.ne.s32.totalorder %s29, %s45
      %p47 = scmp.eq.s32.totalorder %s21, 0
      %p48 = por %p46, %p47
      %s49 = ssub.s32 %s15, %s22
      %p50 = scmp.eq.s32.totalorder %s49, 0
      %s52 = sadd.s32 %s51, 1
      %s53 = scalar_select %p50, %s51, %s52
      %p56 = pneg %p50
      %p57 = scmp.eq.s32.totalorder %s15, 3
      %p58 = por %p56, %p57
      %p59 = scmp.ne.s32.totalorder %s51, %s54
      %p60 = scmp.eq.s32.totalorder %s15, 0
      %p61 = por %p59, %p60
      %p62 = scmp.ne.s32.totalorder %s51, %s54
      %p63 = scmp.eq.s32.totalorder %s20, 3
      %p64 = por %p62, %p63
      %p65 = scmp.ne.s32.totalorder %s54, %s55
      %p66 = scmp.eq.s32.totalorder %s20, 0
      %p67 = por %p65, %p66
      %p68 = scmp.ne.s32.totalorder %s54, %s55
      %p69 = scmp.eq.s32.totalorder %s21, 3
      %p70 = por %p68, %p69
      %p72 = scmp.ne.s32.totalorder %s55, %s71
      %p73 = scmp.eq.s32.totalorder %s21, 0
      %p74 = por %p72, %p73
      %s76 = sadd.s32 %s75, 1
      %p79 = scmp.eq.s32.totalorder %s15, 3
      %p80 = scmp.ne.s32.totalorder %s75, %s77
      %p81 = scmp.eq.s32.totalorder %s15, 0
      %p82 = por %p80, %p81
      %p83 = scmp.ne.s32.totalorder %s75, %s77
      %p84 = scmp.eq.s32.totalorder %s20, 3
      %p85 = por %p83, %p84
      %p86 = scmp.ne.s32.totalorder %s77, %s78
      %p87 = scmp.eq.s32.totalorder %s20, 0
      %p88 = por %p86, %p87
      %p89 = scmp.ne.s32.totalorder %s77, %s78
      %p90 = scmp.eq.s32.totalorder %s21, 3
      %p91 = por %p89, %p90
      %p93 = scmp.ne.s32.totalorder %s78, %s92
      %p94 = scmp.eq.s32.totalorder %s21, 0
      %p95 = por %p93, %p94
      %s97 = sadd.s32 %s96, 1
      %p100 = scmp.eq.s32.totalorder %s15, 3
      %p101 = scmp.ne.s32.totalorder %s96, %s98
      %p102 = scmp.eq.s32.totalorder %s15, 0
      %p103 = por %p101, %p102
      %p104 = scmp.ne.s32.totalorder %s96, %s98
      %p105 = scmp.eq.s32.totalorder %s20, 3
      %p106 = por %p104, %p105
      %p107 = scmp.ne.s32.totalorder %s98, %s99
      %p108 = scmp.eq.s32.totalorder %s20, 0
      %p109 = por %p107, %p108
      %p110 = scmp.ne.s32.totalorder %s98, %s99
      %p111 = scmp.eq.s32.totalorder %s21, 3
      %p112 = por %p110, %p111
      %p114 = scmp.ne.s32.totalorder %s99, %s113
      %p115 = scmp.eq.s32.totalorder %s21, 0
      %p116 = por %p114, %p115
      %s118 = sadd.s32 %s117, 1
      %p121 = scmp.eq.s32.totalorder %s15, 3
      %p122 = scmp.ne.s32.totalorder %s117, %s119
      %p123 = scmp.eq.s32.totalorder %s15, 0
      %p124 = por %p122, %p123
      %p125 = scmp.ne.s32.totalorder %s117, %s119
      %p126 = scmp.eq.s32.totalorder %s20, 3
      %p127 = por %p125, %p126
      %p128 = scmp.ne.s32.totalorder %s119, %s120
      %p129 = scmp.eq.s32.totalorder %s20, 0
      %p130 = por %p128, %p129
      %p131 = scmp.ne.s32.totalorder %s119, %s120
      %p132 = scmp.eq.s32.totalorder %s21, 3
      %p133 = por %p131, %p132
      %p135 = scmp.ne.s32.totalorder %s120, %s134
      %p136 = scmp.eq.s32.totalorder %s21, 0
      %p137 = por %p135, %p136
      %s139 = sadd.s32 %s138, 1
      %p142 = scmp.eq.s32.totalorder %s15, 3
      %p143 = scmp.ne.s32.totalorder %s138, %s140
      %p144 = scmp.eq.s32.totalorder %s15, 0
      %p145 = por %p143, %p144
      %p146 = scmp.ne.s32.totalorder %s138, %s140
      %p147 = scmp.eq.s32.totalorder %s20, 3
      %p148 = por %p146, %p147
      %p149 = scmp.ne.s32.totalorder %s140, %s141
      %p150 = scmp.eq.s32.totalorder %s20, 0
      %p151 = por %p149, %p150
      %p152 = scmp.ne.s32.totalorder %s140, %s141
      %p153 = scmp.eq.s32.totalorder %s21, 3
      %p154 = por %p152, %p153
      %p156 = scmp.ne.s32.totalorder %s141, %s155
      %p157 = scmp.eq.s32.totalorder %s21, 0
      %p158 = por %p156, %p157
      %s159 = ssub.s32 %s15, %s22
      %p160 = scmp.eq.s32.totalorder %s159, 0
      %s162 = sadd.s32 %s161, 1
      %s163 = scalar_select %p160, %s161, %s162
      %p166 = pneg %p160
      %p167 = scmp.eq.s32.totalorder %s15, 3
      %p168 = por %p166, %p167
      %p169 = scmp.ne.s32.totalorder %s161, %s164
      %p170 = scmp.eq.s32.totalorder %s15, 0
      %p171 = por %p169, %p170
      %p172 = scmp.ne.s32.totalorder %s161, %s164
      %p173 = scmp.eq.s32.totalorder %s20, 3
      %p174 = por %p172, %p173
      %p175 = scmp.ne.s32.totalorder %s164, %s165
      %p176 = scmp.eq.s32.totalorder %s20, 0
      %p177 = por %p175, %p176
      %p178 = scmp.ne.s32.totalorder %s164, %s165
      %p179 = scmp.eq.s32.totalorder %s21, 3
      %p180 = por %p178, %p179
      %p182 = scmp.ne.s32.totalorder %s165, %s181
      %p183 = scmp.eq.s32.totalorder %s21, 0
      %p184 = por %p182, %p183
      %p185 = scmp.le.s32.totalorder 1, %s15
      %p186 = scmp.lt.s32.totalorder %s15, 5
      %p187 = pnand %p185, %p186
      %p188 = pneg %p187
      // Predicated region
      $region9: #{stsc_forward.1} parent=5 // pred_check
        _
      $region10: #{stsc_forward.1} parent=5 // pred_check_branch
        %190 = sbr.rel (%p187) target = $region12
      $region11: #{stsc_forward.1} parent=5 // pred_region
        %s191 = ssub.s32 %s15, 1
        // Predicated region
        $region13: #{stsc_forward.1} parent=11 // pred_check
          %p192 = pneg %p88
        $region14: #{stsc_forward.1} parent=11 // pred_check_branch
          %194 = sbr.rel (%p192) target = $region16
        $region15: #{stsc_forward.1} parent=11 // pred_region
          _
        $region16: #{stsc_forward.1} parent=11 // pred_fallthru
          _
        // Predicated region
        $region17: #{stsc_forward.1} parent=11 // pred_check
          %p195 = pneg %p109
        $region18: #{stsc_forward.1} parent=11 // pred_check_branch
          %197 = sbr.rel (%p195) target = $region20
        $region19: #{stsc_forward.1} parent=11 // pred_region
          _
        $region20: #{stsc_forward.1} parent=11 // pred_fallthru
          _
        // Predicated region
        $region21: #{stsc_forward.1} parent=11 // pred_check
          %p198 = pneg %p130
        $region22: #{stsc_forward.1} parent=11 // pred_check_branch
          %200 = sbr.rel (%p198) target = $region24
        $region23: #{stsc_forward.1} parent=11 // pred_region
          _
        $region24: #{stsc_forward.1} parent=11 // pred_fallthru
          _
        // Predicated region
        $region25: #{stsc_forward.1} parent=11 // pred_check
          %p201 = pneg %p151
        $region26: #{stsc_forward.1} parent=11 // pred_check_branch
          %203 = sbr.rel (%p201) target = $region28
        $region27: #{stsc_forward.1} parent=11 // pred_region
          _
        $region28: #{stsc_forward.1} parent=11 // pred_fallthru
          _
      $region12: #{stsc_forward.1} parent=5 // pred_fallthru
        _
      %p204 = scmp.lt.s32.totalorder %s15, 4
      // Predicated region
      $region29: #{stsc_forward.1} parent=5 // pred_check
        %p205 = pneg %p204
      $region30: #{stsc_forward.1} parent=5 // pred_check_branch
        %207 = sbr.rel (%p205) target = $region32
      $region31: #{stsc_forward.1} parent=5 // pred_region
        // Predicated region
        $region33: #{stsc_forward.1} parent=31 // pred_check
          %p208 = pneg %p35
        $region34: #{stsc_forward.1} parent=31 // pred_check_branch
          %210 = sbr.rel (%p208) target = $region36
        $region35: #{stsc_forward.1} parent=31 // pred_region
          %p211 = scmp.lt.s32.totalorder %s15, 3
          %s212 = scalar_select %p211, %s15, 3
          %s213 = smul.addr %s212, 2
          %s214 = smul.addr %s213, 8
          %s215 = scalar_lea.vmem %s0, %s214
        $region36: #{stsc_forward.1} parent=31 // pred_fallthru
          _
        // Predicated region
        $region37: #{stsc_forward.1} parent=31 // pred_check
          %p216 = pneg %p61
        $region38: #{stsc_forward.1} parent=31 // pred_check_branch
          %218 = sbr.rel (%p216) target = $region40
        $region39: #{stsc_forward.1} parent=31 // pred_region
          %s219 = smul.u32 8, %s15
          %p220 = scmp.lt.s32.totalorder %s219, 31
          %s221 = scalar_select %p220, %s219, 31
          %s222 = smul.addr %s221, 8
          %s223 = scalar_lea.vmem %s1, %s222
          %s224 = smul.u32 8, %s15
        $region40: #{stsc_forward.1} parent=31 // pred_fallthru
          _
      $region32: #{stsc_forward.1} parent=5 // pred_fallthru
        _
      %p225 = scmp.le.s32.totalorder 1, %s15
      %p226 = scmp.lt.s32.totalorder %s15, 5
      %p227 = pnand %p225, %p226
      %p228 = pneg %p227
      // Predicated region
      $region41: #{stsc_forward.1} parent=5 // pred_check
        _
      $region42: #{stsc_forward.1} parent=5 // pred_check_branch
        %230 = sbr.rel (%p227) target = $region44
      $region43: #{stsc_forward.1} parent=5 // pred_region
        %s231 = ssub.s32 %s15, 1
        %p232 = scmp.lt.s32.totalorder %s20, 3
        %s233 = scalar_select %p232, %s20, 3
        %s234 = smul.addr %s233, 2
        %s235 = smul.addr %s234, 8
        %s236 = scalar_lea.vmem %s0, %s235
        %p237 = pneg %p41
        %p238 = pneg %p38
        %s239 = smul.u32 8, %s20
        %p240 = scmp.lt.s32.totalorder %s239, 31
        %s241 = scalar_select %p240, %s239, 31
        %s242 = smul.addr %s241, 8
        %s243 = scalar_lea.vmem %s1, %s242
        %p244 = pneg %p67
        %p245 = pneg %p64
        %p246 = pneg %p88
        %p247 = pneg %p85
        %p248 = pneg %p109
        %p249 = pneg %p106
        %p250 = pneg %p130
        %p251 = pneg %p127
        %p252 = pneg %p151
        %p253 = pneg %p148
        %p254 = pneg %p177
        %p255 = pneg %p174
        %s256 = sand.u32 %s164, 1
        %s257 = scalar_lea.sflag [#allocation4], %s256
        %s258 = sand.u32 %s164, 1
        %s259 = smul.addr %s258, 64
        %s260 = scalar_lea.vmem [#allocation3], %s259
        %p261 = scmp.lt.s32.totalorder %s20, 3
        %s262 = scalar_select %p261, %s20, 3
        %s263 = smul.addr %s262, 2
        %s264 = smul.addr %s263, 8
        %s265 = scalar_lea.vmem %s0, %s264
        %s266 = smul.u32 8, %s20
        %p267 = scmp.lt.s32.totalorder %s266, 31
        %s268 = scalar_select %p267, %s266, 31
        %s269 = smul.addr %s268, 8
        %s270 = scalar_lea.vmem %s1, %s269
        %s271 = smul.u32 8, %s20
        %s272 = smul.u32 8, %s20
        %v274 = vld [vmem:[%s265] sm:$0xff]
        %v275 = vpack.c.bf16 %v274, %v274
        %276 = vst [vmem:[#allocation2] sm:$0xf] %v275
        %v277 = vld [vmem:[%s265 + $0x8] sm:$0xff]
        %v278 = vpack.c.bf16 %v277, %v277
        %v280 = vrot.slane %v278, 4
        %282 = vst [vmem:[#allocation2 + $0x20] sm:$0xf0] %v280
        %v283 = vld [vmem:[%s270] sm:$0xff]
        %v284 = vld [vmem:[%s270 + $0x8] sm:$0xff]
        %v285 = vld [vmem:[%s270 + $0x10] sm:$0xff]
        %v286 = vld [vmem:[%s270 + $0x18] sm:$0xff]
        %v287 = vld [vmem:[%s270 + $0x20] sm:$0xff]
        %v288 = vld [vmem:[%s270 + $0x28] sm:$0xff]
        %v289 = vld [vmem:[%s270 + $0x30] sm:$0xff]
        %v290 = vld [vmem:[%s270 + $0x38] sm:$0xff]
        %v291 = vpack.c.bf16 %v284, %v283
        %v292 = vpack.c.bf16 %v286, %v285
        %v293 = vpack.c.bf16 %v288, %v287
        %v294 = vpack.c.bf16 %v290, %v289
        %vm299 = vcmask 1043456
        %v300 = vrot.slane %v291, 4
        %v301 = vrot.slane %v292, 4
        %v302 = vsel %vm299, %v300, %v301
        %v303 = vrot.slane %v293, 4
        %v304 = vsel %vm299, %v301, %v303
        %v305 = vrot.slane %v294, 4
        %v306 = vsel %vm299, %v303, %v305
        %312 = vst [vmem:[#allocation2] sm:$0xf0] %v300
        %313 = vst [vmem:[#allocation2 + $0x8] sm:$0xff] %v302
        %314 = vst [vmem:[#allocation2 + $0x10] sm:$0xff] %v304
        %315 = vst [vmem:[#allocation2 + $0x18] sm:$0xff] %v306
        %316 = vst [vmem:[#allocation2 + $0x20] sm:$0xf] %v305
        %v317 = vld [vmem:[#allocation2] sm:$0xff]
        %v318 = vld [vmem:[#allocation2 + $0x8] sm:$0xff]
        %v319 = vld [vmem:[#allocation2 + $0x10] sm:$0xff]
        %v320 = vld [vmem:[#allocation2 + $0x18] sm:$0xff]
        %v321 = vld [vmem:[%s3] sm:$0xf]
        %v322 = vld [vmem:[%s3 + $0x4] sm:$0xf]
        %v323 = vld [vmem:[%s3 + $0x8] sm:$0xf]
        %v324 = vld [vmem:[%s3 + $0xc] sm:$0xf]
        %v325 = vld [vmem:[%s3 + $0x10] sm:$0xf]
        %v326 = vld [vmem:[%s3 + $0x14] sm:$0xf]
        %v327 = vld [vmem:[%s3 + $0x18] sm:$0xf]
        %v328 = vld [vmem:[%s3 + $0x1c] sm:$0xf]
        %v329 = vld [vmem:[%s3 + $0x20] sm:$0xf]
        %v330 = vld [vmem:[%s3 + $0x24] sm:$0xf]
        %v331 = vld [vmem:[%s3 + $0x28] sm:$0xf]
        %v332 = vld [vmem:[%s3 + $0x2c] sm:$0xf]
        %v333 = vld [vmem:[%s3 + $0x30] sm:$0xf]
        %v334 = vld [vmem:[%s3 + $0x34] sm:$0xf]
        %v335 = vld [vmem:[%s3 + $0x38] sm:$0xf]
        %v336 = vld [vmem:[%s3 + $0x3c] sm:$0xf]
        %v337 = vld [vmem:[#allocation2] sm:$0xf0]
        %v338 = vld [vmem:[#allocation2 + $0x8] sm:$0xff]
        %v339 = vld [vmem:[#allocation2 + $0x10] sm:$0xff]
        %v340 = vld [vmem:[#allocation2 + $0x18] sm:$0xff]
        %v341 = vld [vmem:[#allocation2 + $0x20] sm:$0xf]
        %s342 = scalar_lea.vmem %s3, 64
        %v343 = vld [vmem:[%s342] sm:$0xf]
        %v344 = vld [vmem:[%s342 + $0x4] sm:$0xf]
        %v345 = vld [vmem:[%s342 + $0x8] sm:$0xf]
        %v346 = vld [vmem:[%s342 + $0xc] sm:$0xf]
        %v347 = vld [vmem:[%s342 + $0x10] sm:$0xf]
        %v348 = vld [vmem:[%s342 + $0x14] sm:$0xf]
        %v349 = vld [vmem:[%s342 + $0x18] sm:$0xf]
        %v350 = vld [vmem:[%s342 + $0x1c] sm:$0xf]
        %v351 = vld [vmem:[%s342 + $0x20] sm:$0xf]
        %v352 = vld [vmem:[%s342 + $0x24] sm:$0xf]
        %v353 = vld [vmem:[%s342 + $0x28] sm:$0xf]
        %v354 = vld [vmem:[%s342 + $0x2c] sm:$0xf]
        %v355 = vld [vmem:[%s342 + $0x30] sm:$0xf]
        %v356 = vld [vmem:[%s342 + $0x34] sm:$0xf]
        %v357 = vld [vmem:[%s342 + $0x38] sm:$0xf]
        %v358 = vld [vmem:[%s342 + $0x3c] sm:$0xf]
        %v364 = vrot.slane %v337, 4
        %v365 = vrot.slane %v338, 4
        %v366 = vsel %vm299, %v364, %v365
        %v367 = vrot.slane %v339, 4
        %v368 = vsel %vm299, %v365, %v367
        %v369 = vrot.slane %v340, 4
        %v370 = vsel %vm299, %v367, %v369
        %v371 = vrot.slane %v341, 4
        %v372 = vsel %vm299, %v369, %v371
        %v393 = vunpack.c.l.b16 %v343
        %v394 = vunpack.c.l.b16 %v344
        %v395 = vunpack.c.l.b16 %v345
        %v396 = vunpack.c.l.b16 %v346
        %v397 = vunpack.c.l.b16 %v347
        %v398 = vunpack.c.l.b16 %v348
        %v399 = vunpack.c.l.b16 %v349
        %v400 = vunpack.c.l.b16 %v350
        %v401 = vunpack.c.l.b16 %v351
        %v402 = vunpack.c.l.b16 %v352
        %v403 = vunpack.c.l.b16 %v353
        %v404 = vunpack.c.l.b16 %v354
        %v405 = vunpack.c.l.b16 %v355
        %v406 = vunpack.c.l.b16 %v356
        %v407 = vunpack.c.l.b16 %v357
        %v408 = vunpack.c.l.b16 %v358
        %v409 = vpack.c.b16 %v394, %v393
        %v410 = vpack.c.b16 %v396, %v395
        %v411 = vpack.c.b16 %v398, %v397
        %v412 = vpack.c.b16 %v400, %v399
        %v413 = vpack.c.b16 %v402, %v401
        %v414 = vpack.c.b16 %v404, %v403
        %v415 = vpack.c.b16 %v406, %v405
        %v416 = vpack.c.b16 %v408, %v407
        %425 = vmatprep.subr.bf16.mxu0 0
        %426 = vmatpush1.bf16.msra.mxu0 %v409
        %427 = vmatprep.subr.bf16.mxu0 0
        %428 = vmatpush1.bf16.msra.mxu0 %v410
        %429 = vmatprep.subr.bf16.mxu0 0
        %430 = vmatpush1.bf16.msra.mxu0 %v411
        %431 = vmatprep.subr.bf16.mxu0 0
        %432 = vmatpush1.bf16.msra.mxu0 %v412
        %433 = vmatprep.subr.bf16.mxu0 0
        %434 = vmatpush1.bf16.msra.mxu0 %v413
        %435 = vmatprep.subr.bf16.mxu0 0
        %436 = vmatpush1.bf16.msra.mxu0 %v414
        %437 = vmatprep.subr.bf16.mxu0 0
        %438 = vmatpush1.bf16.msra.mxu0 %v415
        %439 = vmatprep.subr.bf16.mxu0 0
        %440 = vmatpush1.bf16.msra.mxu0 %v416
        %441 = vmatprep.subr.bf16.mxu0 0
        %442 = vmatpush1.bf16.msra.mxu0 0
        %443 = vmatprep.subr.bf16.mxu0 0
        %444 = vmatpush1.bf16.msra.mxu0 0
        %445 = vmatprep.subr.bf16.mxu0 0
        %446 = vmatpush1.bf16.msra.mxu0 0
        %447 = vmatprep.subr.bf16.mxu0 0
        %448 = vmatpush1.bf16.msra.mxu0 0
        %449 = vmatprep.subr.bf16.mxu0 0
        %450 = vmatpush1.bf16.msra.mxu0 0
        %451 = vmatprep.subr.bf16.mxu0 0
        %452 = vmatpush1.bf16.msra.mxu0 0
        %453 = vmatprep.subr.bf16.mxu0 0
        %454 = vmatpush1.bf16.msra.mxu0 0
        %455 = vmatprep.subr.bf16.mxu0 0
        %456 = vmatpush1.bf16.msra.mxu0 0
        %457 = vmatprep.mubr.bf16.mxu0 0
        %458 = vmatmul.mubr.bf16.gmra.mrb[0].mxu0 %v366
        %v459 = vpop.f32.mrb[0].mxu0
        %v460 = vadd.f32 0.0, %v459
        %v461 = vpop.f32.mrb[0].mxu0
        %v462 = vpop.f32.mrb[0].mxu0
        %v463 = vadd.f32 0.0, %v462
        %v464 = vpop.f32.mrb[0].mxu0
        %465 = vmatprep.mubr.bf16.mxu0 0
        %466 = vmatmul.mubr.bf16.gmra.mrb[0].mxu0 %v368
        %v467 = vpop.f32.mrb[0].mxu0
        %v468 = vadd.f32 0.0, %v467
        %v469 = vpop.f32.mrb[0].mxu0
        %v470 = vpop.f32.mrb[0].mxu0
        %v471 = vadd.f32 0.0, %v470
        %v472 = vpop.f32.mrb[0].mxu0
        %473 = vmatprep.mubr.bf16.mxu0 0
        %474 = vmatmul.mubr.bf16.gmra.mrb[0].mxu0 %v370
        %v475 = vpop.f32.mrb[0].mxu0
        %v476 = vadd.f32 0.0, %v475
        %v477 = vpop.f32.mrb[0].mxu0
        %v478 = vpop.f32.mrb[0].mxu0
        %v479 = vadd.f32 0.0, %v478
        %v480 = vpop.f32.mrb[0].mxu0
        %481 = vmatprep.mubr.bf16.mxu0 0
        %482 = vmatmul.mubr.bf16.gmra.mrb[0].mxu0 %v372
        %v483 = vpop.f32.mrb[0].mxu0
        %v484 = vadd.f32 0.0, %v483
        %v485 = vpop.f32.mrb[0].mxu0
        %v486 = vpop.f32.mrb[0].mxu0
        %v487 = vadd.f32 0.0, %v486
        %v488 = vpop.f32.mrb[0].mxu0
        %489 = vdwg.mxu0
        %v506 = vunpack.c.l.b16 %v321
        %v507 = vunpack.c.l.b16 %v322
        %v508 = vunpack.c.l.b16 %v323
        %v509 = vunpack.c.l.b16 %v324
        %v510 = vunpack.c.l.b16 %v325
        %v511 = vunpack.c.l.b16 %v326
        %v512 = vunpack.c.l.b16 %v327
        %v513 = vunpack.c.l.b16 %v328
        %v514 = vunpack.c.l.b16 %v329
        %v515 = vunpack.c.l.b16 %v330
        %v516 = vunpack.c.l.b16 %v331
        %v517 = vunpack.c.l.b16 %v332
        %v518 = vunpack.c.l.b16 %v333
        %v519 = vunpack.c.l.b16 %v334
        %v520 = vunpack.c.l.b16 %v335
        %v521 = vunpack.c.l.b16 %v336
        %v522 = vpack.c.b16 %v507, %v506
        %v523 = vpack.c.b16 %v509, %v508
        %v524 = vpack.c.b16 %v511, %v510
        %v525 = vpack.c.b16 %v513, %v512
        %v526 = vpack.c.b16 %v515, %v514
        %v527 = vpack.c.b16 %v517, %v516
        %v528 = vpack.c.b16 %v519, %v518
        %v529 = vpack.c.b16 %v521, %v520
        %538 = vmatprep.subr.bf16.mxu0 0
        %539 = vmatpush1.bf16.msra.mxu0 %v522
        %540 = vmatprep.subr.bf16.mxu0 0
        %541 = vmatpush1.bf16.msra.mxu0 %v523
        %542 = vmatprep.subr.bf16.mxu0 0
        %543 = vmatpush1.bf16.msra.mxu0 %v524
        %544 = vmatprep.subr.bf16.mxu0 0
        %545 = vmatpush1.bf16.msra.mxu0 %v525
        %546 = vmatprep.subr.bf16.mxu0 0
        %547 = vmatpush1.bf16.msra.mxu0 %v526
        %548 = vmatprep.subr.bf16.mxu0 0
        %549 = vmatpush1.bf16.msra.mxu0 %v527
        %550 = vmatprep.subr.bf16.mxu0 0
        %551 = vmatpush1.bf16.msra.mxu0 %v528
        %552 = vmatprep.subr.bf16.mxu0 0
        %553 = vmatpush1.bf16.msra.mxu0 %v529
        %554 = vmatprep.subr.bf16.mxu0 0
        %555 = vmatpush1.bf16.msra.mxu0 0
        %556 = vmatprep.subr.bf16.mxu0 0
        %557 = vmatpush1.bf16.msra.mxu0 0
        %558 = vmatprep.subr.bf16.mxu0 0
        %559 = vmatpush1.bf16.msra.mxu0 0
        %560 = vmatprep.subr.bf16.mxu0 0
        %561 = vmatpush1.bf16.msra.mxu0 0
        %562 = vmatprep.subr.bf16.mxu0 0
        %563 = vmatpush1.bf16.msra.mxu0 0
        %564 = vmatprep.subr.bf16.mxu0 0
        %565 = vmatpush1.bf16.msra.mxu0 0
        %566 = vmatprep.subr.bf16.mxu0 0
        %567 = vmatpush1.bf16.msra.mxu0 0
        %568 = vmatprep.subr.bf16.mxu0 0
        %569 = vmatpush1.bf16.msra.mxu0 0
        %570 = vmatprep.mubr.bf16.mxu0 0
        %571 = vmatmul.mubr.bf16.gmra.mrb[0].mxu0 %v317
        %v572 = vpop.f32.mrb[0].mxu0
        %v573 = vadd.f32 %v460, %v572
        %v574 = vpop.f32.mrb[0].mxu0
        %v575 = vpop.f32.mrb[0].mxu0
        %v576 = vadd.f32 %v463, %v575
        %v577 = vpop.f32.mrb[0].mxu0
        %578 = vmatprep.mubr.bf16.mxu0 0
        %579 = vmatmul.mubr.bf16.gmra.mrb[0].mxu0 %v318
        %v580 = vpop.f32.mrb[0].mxu0
        %v581 = vadd.f32 %v468, %v580
        %v582 = vpop.f32.mrb[0].mxu0
        %v583 = vpop.f32.mrb[0].mxu0
        %v584 = vadd.f32 %v471, %v583
        %v585 = vpop.f32.mrb[0].mxu0
        %586 = vmatprep.mubr.bf16.mxu0 0
        %587 = vmatmul.mubr.bf16.gmra.mrb[0].mxu0 %v319
        %v588 = vpop.f32.mrb[0].mxu0
        %v589 = vadd.f32 %v476, %v588
        %v590 = vpop.f32.mrb[0].mxu0
        %v591 = vpop.f32.mrb[0].mxu0
        %v592 = vadd.f32 %v479, %v591
        %v593 = vpop.f32.mrb[0].mxu0
        %594 = vmatprep.mubr.bf16.mxu0 0
        %595 = vmatmul.mubr.bf16.gmra.mrb[0].mxu0 %v320
        %v596 = vpop.f32.mrb[0].mxu0
        %v597 = vadd.f32 %v484, %v596
        %v598 = vpop.f32.mrb[0].mxu0
        %v599 = vpop.f32.mrb[0].mxu0
        %v600 = vadd.f32 %v487, %v599
        %v601 = vpop.f32.mrb[0].mxu0
        %602 = vdwg.mxu0
        %v603 = vld [vmem:[#allocation2 + $0x20] sm:$0xff]
        %s604 = scalar_lea.vmem %s3, 128
        %v605 = vld [vmem:[%s604] sm:$0xf]
        %v606 = vld [vmem:[%s604 + $0x4] sm:$0xf]
        %v607 = vld [vmem:[%s604 + $0x8] sm:$0xf]
        %v608 = vld [vmem:[%s604 + $0xc] sm:$0xf]
        %v609 = vld [vmem:[%s604 + $0x10] sm:$0xf]
        %v610 = vld [vmem:[%s604 + $0x14] sm:$0xf]
        %v611 = vld [vmem:[%s604 + $0x18] sm:$0xf]
        %v612 = vld [vmem:[%s604 + $0x1c] sm:$0xf]
        %v613 = vld [vmem:[%s604 + $0x20] sm:$0xf]
        %v614 = vld [vmem:[%s604 + $0x24] sm:$0xf]
        %v615 = vld [vmem:[%s604 + $0x28] sm:$0xf]
        %v616 = vld [vmem:[%s604 + $0x2c] sm:$0xf]
        %v617 = vld [vmem:[%s604 + $0x30] sm:$0xf]
        %v618 = vld [vmem:[%s604 + $0x34] sm:$0xf]
        %v619 = vld [vmem:[%s604 + $0x38] sm:$0xf]
        %v620 = vld [vmem:[%s604 + $0x3c] sm:$0xf]
        %v637 = vunpack.c.l.b16 %v605
        %v638 = vunpack.c.l.b16 %v606
        %v639 = vunpack.c.l.b16 %v607
        %v640 = vunpack.c.l.b16 %v608
        %v641 = vunpack.c.l.b16 %v609
        %v642 = vunpack.c.l.b16 %v610
        %v643 = vunpack.c.l.b16 %v611
        %v644 = vunpack.c.l.b16 %v612
        %v645 = vunpack.c.l.b16 %v613
        %v646 = vunpack.c.l.b16 %v614
        %v647 = vunpack.c.l.b16 %v615
        %v648 = vunpack.c.l.b16 %v616
        %v649 = vunpack.c.l.b16 %v617
        %v650 = vunpack.c.l.b16 %v618
        %v651 = vunpack.c.l.b16 %v619
        %v652 = vunpack.c.l.b16 %v620
        %v653 = vpack.c.b16 %v638, %v637
        %v654 = vpack.c.b16 %v640, %v639
        %v655 = vpack.c.b16 %v642, %v641
        %v656 = vpack.c.b16 %v644, %v643
        %v657 = vpack.c.b16 %v646, %v645
        %v658 = vpack.c.b16 %v648, %v647
        %v659 = vpack.c.b16 %v650, %v649
        %v660 = vpack.c.b16 %v652, %v651
        %669 = vmatprep.subr.bf16.mxu0 0
        %670 = vmatpush1.bf16.msra.mxu0 %v653
        %671 = vmatprep.subr.bf16.mxu0 0
        %672 = vmatpush1.bf16.msra.mxu0 %v654
        %673 = vmatprep.subr.bf16.mxu0 0
        %674 = vmatpush1.bf16.msra.mxu0 %v655
        %675 = vmatprep.subr.bf16.mxu0 0
        %676 = vmatpush1.bf16.msra.mxu0 %v656
        %677 = vmatprep.subr.bf16.mxu0 0
        %678 = vmatpush1.bf16.msra.mxu0 %v657
        %679 = vmatprep.subr.bf16.mxu0 0
        %680 = vmatpush1.bf16.msra.mxu0 %v658
        %681 = vmatprep.subr.bf16.mxu0 0
        %682 = vmatpush1.bf16.msra.mxu0 %v659
        %683 = vmatprep.subr.bf16.mxu0 0
        %684 = vmatpush1.bf16.msra.mxu0 %v660
        %685 = vmatprep.subr.bf16.mxu0 0
        %686 = vmatpush1.bf16.msra.mxu0 0
        %687 = vmatprep.subr.bf16.mxu0 0
        %688 = vmatpush1.bf16.msra.mxu0 0
        %689 = vmatprep.subr.bf16.mxu0 0
        %690 = vmatpush1.bf16.msra.mxu0 0
        %691 = vmatprep.subr.bf16.mxu0 0
        %692 = vmatpush1.bf16.msra.mxu0 0
        %693 = vmatprep.subr.bf16.mxu0 0
        %694 = vmatpush1.bf16.msra.mxu0 0
        %695 = vmatprep.subr.bf16.mxu0 0
        %696 = vmatpush1.bf16.msra.mxu0 0
        %697 = vmatprep.subr.bf16.mxu0 0
        %698 = vmatpush1.bf16.msra.mxu0 0
        %699 = vmatprep.subr.bf16.mxu0 0
        %700 = vmatpush1.bf16.msra.mxu0 0
        %701 = vmatprep.mubr.bf16.mxu0 0
        %702 = vmatmul.mubr.bf16.gmra.mrb[0].mxu0 %v338
        %v703 = vpop.f32.mrb[0].mxu0
        %v704 = vadd.f32 0.0, %v703
        %v705 = vpop.f32.mrb[0].mxu0
        %v706 = vpop.f32.mrb[0].mxu0
        %v707 = vadd.f32 0.0, %v706
        %v708 = vpop.f32.mrb[0].mxu0
        %709 = vmatprep.mubr.bf16.mxu0 0
        %710 = vmatmul.mubr.bf16.gmra.mrb[0].mxu0 %v339
        %v711 = vpop.f32.mrb[0].mxu0
        %v712 = vadd.f32 0.0, %v711
        %v713 = vpop.f32.mrb[0].mxu0
        %v714 = vpop.f32.mrb[0].mxu0
        %v715 = vadd.f32 0.0, %v714
        %v716 = vpop.f32.mrb[0].mxu0
        %717 = vmatprep.mubr.bf16.mxu0 0
        %718 = vmatmul.mubr.bf16.gmra.mrb[0].mxu0 %v340
        %v719 = vpop.f32.mrb[0].mxu0
        %v720 = vadd.f32 0.0, %v719
        %v721 = vpop.f32.mrb[0].mxu0
        %v722 = vpop.f32.mrb[0].mxu0
        %v723 = vadd.f32 0.0, %v722
        %v724 = vpop.f32.mrb[0].mxu0
        %725 = vmatprep.mubr.bf16.mxu0 0
        %726 = vmatmul.mubr.bf16.gmra.mrb[0].mxu0 %v603
        %v727 = vpop.f32.mrb[0].mxu0
        %v728 = vadd.f32 0.0, %v727
        %v729 = vpop.f32.mrb[0].mxu0
        %v730 = vpop.f32.mrb[0].mxu0
        %v731 = vadd.f32 0.0, %v730
        %v732 = vpop.f32.mrb[0].mxu0
        %733 = vdwg.mxu0
        %v734 = vadd.f32 %v573, %v704
        %v735 = vadd.f32 %v576, %v707
        %v736 = vadd.f32 %v581, %v712
        %v737 = vadd.f32 %v584, %v715
        %v738 = vadd.f32 %v589, %v720
        %v739 = vadd.f32 %v592, %v723
        %v740 = vadd.f32 %v597, %v728
        %v741 = vadd.f32 %v600, %v731
        %v742 = vld [vmem:[%s4] sm:$0x1]
        %v744 = vlaneseq
        %v745 = vshrl.u32 %v744, 7
        %v746 = vsub.s32 0, %v745
        %v747 = vrot.slane %v742, %v746
        %v749 = vadd.f32 %v734, %v747
        %v750 = vadd.f32 %v735, %v747
        %v751 = vadd.f32 %v736, %v747
        %v752 = vadd.f32 %v737, %v747
        %v753 = vadd.f32 %v738, %v747
        %v754 = vadd.f32 %v739, %v747
        %v755 = vadd.f32 %v740, %v747
        %v756 = vadd.f32 %v741, %v747
        %v757 = vmax.f32 %v749, 0.0
        %v758 = vmax.f32 %v750, 0.0
        %v759 = vmax.f32 %v751, 0.0
        %v760 = vmax.f32 %v752, 0.0
        %v761 = vmax.f32 %v753, 0.0
        %v762 = vmax.f32 %v754, 0.0
        %v763 = vmax.f32 %v755, 0.0
        %v764 = vmax.f32 %v756, 0.0
        %v765 = vpack.c.bf16 %v758, %v757
        %v766 = vpack.c.bf16 %v760, %v759
        %v767 = vpack.c.bf16 %v762, %v761
        %v768 = vpack.c.bf16 %v764, %v763
        %v769 = vld [vmem:[%s5] sm:$0xf]
        %v770 = vld [vmem:[%s5 + $0x4] sm:$0xf]
        %v771 = vld [vmem:[%s5 + $0x8] sm:$0xf]
        %v772 = vld [vmem:[%s5 + $0xc] sm:$0xf]
        %v773 = vld [vmem:[%s5 + $0x10] sm:$0xf]
        %v774 = vld [vmem:[%s5 + $0x14] sm:$0xf]
        %v775 = vld [vmem:[%s5 + $0x18] sm:$0xf]
        %v776 = vld [vmem:[%s5 + $0x1c] sm:$0xf]
        %v777 = vld [vmem:[%s5 + $0x20] sm:$0xf]
        %v778 = vld [vmem:[%s5 + $0x24] sm:$0xf]
        %v779 = vld [vmem:[%s5 + $0x28] sm:$0xf]
        %v780 = vld [vmem:[%s5 + $0x2c] sm:$0xf]
        %v781 = vld [vmem:[%s5 + $0x30] sm:$0xf]
        %v782 = vld [vmem:[%s5 + $0x34] sm:$0xf]
        %v783 = vld [vmem:[%s5 + $0x38] sm:$0xf]
        %v784 = vld [vmem:[%s5 + $0x3c] sm:$0xf]
        %v801 = vunpack.c.l.b16 %v769
        %v802 = vunpack.c.l.b16 %v770
        %v803 = vunpack.c.l.b16 %v771
        %v804 = vunpack.c.l.b16 %v772
        %v805 = vunpack.c.l.b16 %v773
        %v806 = vunpack.c.l.b16 %v774
        %v807 = vunpack.c.l.b16 %v775
        %v808 = vunpack.c.l.b16 %v776
        %v809 = vunpack.c.l.b16 %v777
        %v810 = vunpack.c.l.b16 %v778
        %v811 = vunpack.c.l.b16 %v779
        %v812 = vunpack.c.l.b16 %v780
        %v813 = vunpack.c.l.b16 %v781
        %v814 = vunpack.c.l.b16 %v782
        %v815 = vunpack.c.l.b16 %v783
        %v816 = vunpack.c.l.b16 %v784
        %v817 = vpack.c.b16 %v802, %v801
        %v818 = vpack.c.b16 %v804, %v803
        %v819 = vpack.c.b16 %v806, %v805
        %v820 = vpack.c.b16 %v808, %v807
        %v821 = vpack.c.b16 %v810, %v809
        %v822 = vpack.c.b16 %v812, %v811
        %v823 = vpack.c.b16 %v814, %v813
        %v824 = vpack.c.b16 %v816, %v815
        %833 = vmatprep.subr.bf16.mxu0 0
        %834 = vmatpush1.bf16.msra.mxu0 %v817
        %835 = vmatprep.subr.bf16.mxu0 0
        %836 = vmatpush1.bf16.msra.mxu0 %v818
        %837 = vmatprep.subr.bf16.mxu0 0
        %838 = vmatpush1.bf16.msra.mxu0 %v819
        %839 = vmatprep.subr.bf16.mxu0 0
        %840 = vmatpush1.bf16.msra.mxu0 %v820
        %841 = vmatprep.subr.bf16.mxu0 0
        %842 = vmatpush1.bf16.msra.mxu0 %v821
        %843 = vmatprep.subr.bf16.mxu0 0
        %844 = vmatpush1.bf16.msra.mxu0 %v822
        %845 = vmatprep.subr.bf16.mxu0 0
        %846 = vmatpush1.bf16.msra.mxu0 %v823
        %847 = vmatprep.subr.bf16.mxu0 0
        %848 = vmatpush1.bf16.msra.mxu0 %v824
        %849 = vmatprep.subr.bf16.mxu0 0
        %850 = vmatpush1.bf16.msra.mxu0 0
        %851 = vmatprep.subr.bf16.mxu0 0
        %852 = vmatpush1.bf16.msra.mxu0 0
        %853 = vmatprep.subr.bf16.mxu0 0
        %854 = vmatpush1.bf16.msra.mxu0 0
        %855 = vmatprep.subr.bf16.mxu0 0
        %856 = vmatpush1.bf16.msra.mxu0 0
        %857 = vmatprep.subr.bf16.mxu0 0
        %858 = vmatpush1.bf16.msra.mxu0 0
        %859 = vmatprep.subr.bf16.mxu0 0
        %860 = vmatpush1.bf16.msra.mxu0 0
        %861 = vmatprep.subr.bf16.mxu0 0
        %862 = vmatpush1.bf16.msra.mxu0 0
        %863 = vmatprep.subr.bf16.mxu0 0
        %864 = vmatpush1.bf16.msra.mxu0 0
        %865 = vmatprep.mubr.bf16.mxu0 0
        %866 = vmatmul.mubr.bf16.gmra.mrb[0].mxu0 %v765
        %v867 = vpop.f32.mrb[0].mxu0
        %v868 = vadd.f32 0.0, %v867
        %v869 = vpop.f32.mrb[0].mxu0
        %v870 = vpop.f32.mrb[0].mxu0
        %v871 = vadd.f32 0.0, %v870
        %v872 = vpop.f32.mrb[0].mxu0
        %873 = vmatprep.mubr.bf16.mxu0 0
        %874 = vmatmul.mubr.bf16.gmra.mrb[0].mxu0 %v766
        %v875 = vpop.f32.mrb[0].mxu0
        %v876 = vadd.f32 0.0, %v875
        %v877 = vpop.f32.mrb[0].mxu0
        %v878 = vpop.f32.mrb[0].mxu0
        %v879 = vadd.f32 0.0, %v878
        %v880 = vpop.f32.mrb[0].mxu0
        %881 = vmatprep.mubr.bf16.mxu0 0
        %882 = vmatmul.mubr.bf16.gmra.mrb[0].mxu0 %v767
        %v883 = vpop.f32.mrb[0].mxu0
        %v884 = vadd.f32 0.0, %v883
        %v885 = vpop.f32.mrb[0].mxu0
        %v886 = vpop.f32.mrb[0].mxu0
        %v887 = vadd.f32 0.0, %v886
        %v888 = vpop.f32.mrb[0].mxu0
        %889 = vmatprep.mubr.bf16.mxu0 0
        %890 = vmatmul.mubr.bf16.gmra.mrb[0].mxu0 %v768
        %v891 = vpop.f32.mrb[0].mxu0
        %v892 = vadd.f32 0.0, %v891
        %v893 = vpop.f32.mrb[0].mxu0
        %v894 = vpop.f32.mrb[0].mxu0
        %v895 = vadd.f32 0.0, %v894
        %v896 = vpop.f32.mrb[0].mxu0
        %897 = vdwg.mxu0
        %v898 = vmin.f32 %v868, 30.0
        %v899 = vmin.f32 %v871, 30.0
        %v900 = vmin.f32 %v876, 30.0
        %v901 = vmin.f32 %v879, 30.0
        %v902 = vmin.f32 %v884, 30.0
        %v903 = vmin.f32 %v887, 30.0
        %v904 = vmin.f32 %v892, 30.0
        %v905 = vmin.f32 %v895, 30.0
        %v906 = vmul.f32 %v898, 1.442695
        %v907 = vpow.pop %v906
        %v908 = vmul.f32 %v899, 1.442695
        %v909 = vpow.pop %v908
        %v910 = vmul.f32 %v900, 1.442695
        %v911 = vpow.pop %v910
        %v912 = vmul.f32 %v901, 1.442695
        %v913 = vpow.pop %v912
        %v914 = vmul.f32 %v902, 1.442695
        %v915 = vpow.pop %v914
        %v916 = vmul.f32 %v903, 1.442695
        %v917 = vpow.pop %v916
        %v918 = vmul.f32 %v904, 1.442695
        %v919 = vpow.pop %v918
        %v920 = vmul.f32 %v905, 1.442695
        %v921 = vpow.pop %v920
        %v922 = vadd.f32 %v907, 1.0
        %v923 = vadd.f32 %v909, 1.0
        %v924 = vadd.f32 %v911, 1.0
        %v925 = vadd.f32 %v913, 1.0
        %v926 = vadd.f32 %v915, 1.0
        %v927 = vadd.f32 %v917, 1.0
        %v928 = vadd.f32 %v919, 1.0
        %v929 = vadd.f32 %v921, 1.0
        %v930 = vrcp.pop %v922
        %v931 = vrcp.pop %v923
        %v932 = vrcp.pop %v924
        %v933 = vrcp.pop %v925
        %v934 = vrcp.pop %v926
        %v935 = vrcp.pop %v927
        %v936 = vrcp.pop %v928
        %v937 = vrcp.pop %v929
        %v938 = vld [vmem:[%s265] sm:$0xff]
        %v939 = vld [vmem:[%s270] sm:$0xff]
        %v940 = vld [vmem:[%s270 + $0x8] sm:$0xff]
        %v941 = vld [vmem:[%s270 + $0x10] sm:$0xff]
        %v942 = vld [vmem:[%s270 + $0x18] sm:$0xff]
        %v943 = vld [vmem:[%s270 + $0x20] sm:$0xff]
        %v944 = vld [vmem:[%s270 + $0x28] sm:$0xff]
        %v945 = vld [vmem:[%s270 + $0x30] sm:$0xff]
        %v946 = vld [vmem:[%s2] sm:$0x1]
        %v947 = vlaneseq
        %v948 = vshrl.u32 %v947, 7
        %v949 = vsub.s32 0, %v948
        %v950 = vrot.slane %v946, %v949
        %v951 = vmul.f32 %v938, %v950
        %v952 = vmul.f32 %v939, %v950
        %v953 = vmul.f32 %v940, %v950
        %v954 = vmul.f32 %v941, %v950
        %v955 = vmul.f32 %v942, %v950
        %v956 = vmul.f32 %v943, %v950
        %v957 = vmul.f32 %v944, %v950
        %v958 = vmul.f32 %v945, %v950
        %v959 = vld [vmem:[%s270] sm:$0xff]
        %v960 = vld [vmem:[%s270 + $0x8] sm:$0xff]
        %v961 = vld [vmem:[%s270 + $0x10] sm:$0xff]
        %v962 = vld [vmem:[%s270 + $0x18] sm:$0xff]
        %v963 = vld [vmem:[%s270 + $0x20] sm:$0xff]
        %v964 = vld [vmem:[%s270 + $0x28] sm:$0xff]
        %v965 = vld [vmem:[%s270 + $0x30] sm:$0xff]
        %v966 = vld [vmem:[%s270 + $0x38] sm:$0xff]
        %v967 = vld [vmem:[%s2 + $0x1] sm:$0x1]
        %v968 = vlaneseq
        %v969 = vshrl.u32 %v968, 7
        %v970 = vsub.s32 0, %v969
        %v971 = vrot.slane %v967, %v970
        %v972 = vmul.f32 %v959, %v971
        %v973 = vmul.f32 %v960, %v971
        %v974 = vmul.f32 %v961, %v971
        %v975 = vmul.f32 %v962, %v971
        %v976 = vmul.f32 %v963, %v971
        %v977 = vmul.f32 %v964, %v971
        %v978 = vmul.f32 %v965, %v971
        %v979 = vmul.f32 %v966, %v971
        %v980 = vadd.f32 %v951, %v972
        %v981 = vadd.f32 %v952, %v973
        %v982 = vadd.f32 %v953, %v974
        %v983 = vadd.f32 %v954, %v975
        %v984 = vadd.f32 %v955, %v976
        %v985 = vadd.f32 %v956, %v977
        %v986 = vadd.f32 %v957, %v978
        %v987 = vadd.f32 %v958, %v979
        %v988 = vld [vmem:[%s265 + $0x8] sm:$0xff]
        %v989 = vld [vmem:[%s2 + $0x2] sm:$0x1]
        %v990 = vlaneseq
        %v991 = vshrl.u32 %v990, 7
        %v992 = vsub.s32 0, %v991
        %v993 = vrot.slane %v989, %v992
        %v994 = vmul.f32 %v960, %v993
        %v995 = vmul.f32 %v961, %v993
        %v996 = vmul.f32 %v962, %v993
        %v997 = vmul.f32 %v963, %v993
        %v998 = vmul.f32 %v964, %v993
        %v999 = vmul.f32 %v965, %v993
        %v1000 = vmul.f32 %v966, %v993
        %v1001 = vmul.f32 %v988, %v993
        %v1002 = vadd.f32 %v980, %v994
        %v1003 = vadd.f32 %v981, %v995
        %v1004 = vadd.f32 %v982, %v996
        %v1005 = vadd.f32 %v983, %v997
        %v1006 = vadd.f32 %v984, %v998
        %v1007 = vadd.f32 %v985, %v999
        %v1008 = vadd.f32 %v986, %v1000
        %v1009 = vadd.f32 %v987, %v1001
        %v1010 = vmul.f32 %v1002, %v930
        %v1011 = vmul.f32 %v1003, %v931
        %v1012 = vmul.f32 %v1004, %v932
        %v1013 = vmul.f32 %v1005, %v933
        %v1014 = vmul.f32 %v1006, %v934
        %v1015 = vmul.f32 %v1007, %v935
        %v1016 = vmul.f32 %v1008, %v936
        %v1017 = vmul.f32 %v1009, %v937
        %1018 = vst [vmem:[%s260] sm:$0xff] %v1010
        %1019 = vst [vmem:[%s260 + $0x8] sm:$0xff] %v1011
        %1020 = vst [vmem:[%s260 + $0x10] sm:$0xff] %v1012
        %1021 = vst [vmem:[%s260 + $0x18] sm:$0xff] %v1013
        %1022 = vst [vmem:[%s260 + $0x20] sm:$0xff] %v1014
        %1023 = vst [vmem:[%s260 + $0x28] sm:$0xff] %v1015
        %1024 = vst [vmem:[%s260 + $0x30] sm:$0xff] %v1016
        %1025 = vst [vmem:[%s260 + $0x38] sm:$0xff] %v1017
        %s1026 = sand.u32 %s164, 1
        %s1027 = scalar_lea.sflag [#allocation4], %s1026
        %s1028 = sand.u32 %s164, 1
        %s1029 = smul.addr %s1028, 64
        %s1030 = scalar_lea.vmem [#allocation3], %s1029
        // Predicated region
        $region45: #{stsc_forward.1} parent=43 // pred_check
          %p1031 = pneg %p174
        $region46: #{stsc_forward.1} parent=43 // pred_check_branch
          %1033 = sbr.rel (%p1031) target = $region48
        $region47: #{stsc_forward.1} parent=43 // pred_region
          %s1034 = smul.u32 8, %s20
          %s1036 = ssub.s32 1024, 1024
          %1037 = vsyncadd %s1027, %s1036
          %s1038 = smul.addr %s1034, 128
          %s1039 = scalar_lea.hbm %s6, %s1038
          %s1040 = sshll.u32 %s1030, 4
          %s1041 = int_to_ptr.vmem [resolvable:$true] %s1040
          %1046 = dma.vmem_to_hbm [thread:$0]  %s1041, 1024, %s1039, %s1027, 128, 128, 8
        $region48: #{stsc_forward.1} parent=43 // pred_fallthru
          _
      $region44: #{stsc_forward.1} parent=5 // pred_fallthru
        _
      %p1047 = scmp.le.s32.totalorder 2, %s15
      // Predicated region
      $region49: #{stsc_forward.1} parent=5 // pred_check
        %p1048 = pneg %p1047
      $region50: #{stsc_forward.1} parent=5 // pred_check_branch
        %1050 = sbr.rel (%p1048) target = $region52
      $region51: #{stsc_forward.1} parent=5 // pred_region
        %s1051 = ssub.s32 %s15, 2
        // Predicated region
        $region53: #{stsc_forward.1} parent=51 // pred_check
          %p1052 = pneg %p180
        $region54: #{stsc_forward.1} parent=51 // pred_check_branch
          %1054 = sbr.rel (%p1052) target = $region56
        $region55: #{stsc_forward.1} parent=51 // pred_region
          %s1055 = sand.u32 %s165, 1
          %s1056 = scalar_lea.sflag [#allocation4], %s1055
          %s1057 = sand.u32 %s165, 1
          %s1058 = smul.addr %s1057, 64
          %s1059 = scalar_lea.vmem [#allocation3], %s1058
          %1060 = dma.done %s1056, 1024
        $region56: #{stsc_forward.1} parent=51 // pred_fallthru
          _
      $region52: #{stsc_forward.1} parent=5 // pred_fallthru
        _
    $region6: #{stsc_forward.1} parent=1 // loop_footer
      %s19 = sadd.s32 1, %s15
    $region7: #{stsc_forward.1} parent=1 // loop_footer_branch
      %14 = sbr.rel target = $region3
    $region8: #{stsc_forward.1} parent=1 // loop_exit
      _
    %1061 = vsyncpa [#allocation4], 1
    %s1062 = scalar_lea.sflag [#allocation4], 1
    %1063 = vsyncpa %s1062, 1

</llo_original>
